<compile_context>
chip_gen: v6e
topology: v6e:2x2x1
jax: 0.10.0
libtpu: 0.0.40
codegen_flags: <defaults>
</compile_context>

<pallas_src>
import functools

import numpy as np

import jax
import jax.numpy as jnp
from jax import lax
from jax.experimental import pallas as pl
from jax.experimental.pallas import tpu as pltpu


# ----------------------------------------------------------------------------
# Kernel
# ----------------------------------------------------------------------------
def _make_kernel(n_views):
    """Fused maxpool + conv1 + relu + conv2 + relu kernel.

    Refs (per grid step, NB = batch rows per step):
      xw_ref : (n_views, NB, K0)  window views of the input (n_views=4 when pooling)
      w1_ref : (K0, K1)           conv1 as a dense matrix (doubly block-Toeplitz)
      b1_ref : (1, K1)            conv1 bias, tiled per output position
      w2_ref : (K1, K2)           conv2 as a dense matrix
      b2_ref : (1, K2)            conv2 bias, tiled per output position
      o_ref  : (NB, K2)           flattened NHWC output (lane-dense)
    """

    def kernel(xw_ref, w1_ref, b1_ref, w2_ref, b2_ref, o_ref):
        # ---- 2x2 max-pool (VPU): max over the four window-offset views ----
        if n_views == 4:
            pooled = jnp.maximum(jnp.maximum(xw_ref[0], xw_ref[1]),
                                 jnp.maximum(xw_ref[2], xw_ref[3]))
        else:
            # no downsampling: feed the input straight into conv1 (no copy)
            pooled = xw_ref[0]

        # ---- conv1 (3x3 valid) + bias + ReLU : one MXU dot ----
        h1 = jnp.dot(pooled, w1_ref[...], preferred_element_type=jnp.float32)
        h1 = jnp.maximum(h1 + b1_ref[...], 0.0)

        # ---- conv2 (3x3 valid) + bias + ReLU : one MXU dot ----
        out = jnp.dot(h1, w2_ref[...], preferred_element_type=jnp.float32)
        out = jnp.maximum(out + b2_ref[...], 0.0)

        # ---- lane-dense output store (K2 = HO2*WO2*Cout, 128 for the test shape) ----
        o_ref[...] = out.astype(o_ref.dtype)

    return kernel


# ----------------------------------------------------------------------------
# Wrapper-side (input-independent) weight plumbing: 3x3 valid conv -> matrix
# ----------------------------------------------------------------------------
def _conv3x3_as_matrix(w, Hi, Wi):
    """Return M of shape (Hi*Wi*Ci, Ho*Wo*Co) with x.flatten() @ M == valid 3x3 conv.

    x is flattened HWC row-major; output is flattened HWC row-major.
    w is HWIO (3, 3, Ci, Co).
    """
    Ci, Co = w.shape[2], w.shape[3]
    Ho, Wo = Hi - 2, Wi - 2

    h = np.arange(Hi).reshape(Hi, 1, 1, 1, 1, 1)
    wi = np.arange(Wi).reshape(1, Wi, 1, 1, 1, 1)
    ci = np.arange(Ci).reshape(1, 1, Ci, 1, 1, 1)
    r = np.arange(Ho).reshape(1, 1, 1, Ho, 1, 1)
    c = np.arange(Wo).reshape(1, 1, 1, 1, Wo, 1)
    co = np.arange(Co).reshape(1, 1, 1, 1, 1, Co)

    dy = h - r
    dx = wi - c
    valid = (dy >= 0) & (dy <= 2) & (dx >= 0) & (dx <= 2)       # (Hi,Wi,1,Ho,Wo,1)
    dyc = np.clip(dy, 0, 2)
    dxc = np.clip(dx, 0, 2)

    vals = w[dyc, dxc, ci, co]                                   # (Hi,Wi,Ci,Ho,Wo,Co)
    vals = jnp.where(jnp.asarray(valid), vals, jnp.zeros((), w.dtype))
    return vals.reshape(Hi * Wi * Ci, Ho * Wo * Co)


# ----------------------------------------------------------------------------
# Public entry point
# ----------------------------------------------------------------------------
@functools.partial(jax.jit, static_argnames=("to_downsample",))
def down_block_pallas(x_nchw, w1, b1, w2, b2, to_downsample=True):
    """x_nchw: (N, Cin, H, W) f32. w1: (3,3,Cin,Cout) HWIO, w2: (3,3,Cout,Cout) HWIO."""
    N, Cin, H, W = x_nchw.shape
    Cout = w1.shape[-1]

    if to_downsample:
        HP, WP = H // 2, W // 2
    else:
        HP, WP = H, W
    HO1, WO1 = HP - 2, WP - 2
    HO2, WO2 = HO1 - 2, WO1 - 2
    K0 = HP * WP * Cin
    K1 = HO1 * WO1 * Cout
    K2 = HO2 * WO2 * Cout

    x_nhwc = jnp.transpose(x_nchw, (0, 2, 3, 1)).astype(jnp.float32)

    # Window views for the 2x2 max-pool (layout plumbing only; max happens in-kernel).
    if to_downsample:
        views = [x_nhwc[:, dy:2 * HP:2, dx:2 * WP:2, :]
                 for dy in (0, 1) for dx in (0, 1)]
        xw = jnp.stack(views, axis=0).reshape(4, N, K0)
        n_views = 4
    else:
        xw = x_nhwc.reshape(1, N, K0)
        n_views = 1

    # Conv weights as dense matmul matrices; biases tiled per output position.
    w1m = _conv3x3_as_matrix(w1.astype(jnp.float32), HP, WP)      # (K0, K1)
    w2m = _conv3x3_as_matrix(w2.astype(jnp.float32), HO1, WO1)    # (K1, K2)
    b1v = jnp.tile(b1.astype(jnp.float32), HO1 * WO1).reshape(1, K1)
    b2v = jnp.tile(b2.astype(jnp.float32), HO2 * WO2).reshape(1, K2)

    # Whole (small) batch per grid step; tile only if the batch gets large.
    NB = N if N <= 8 else 8
    grid = (pl.cdiv(N, NB),)

    kernel = _make_kernel(n_views)

    out_flat = pl.pallas_call(
        kernel,
        out_shape=jax.ShapeDtypeStruct((N, K2), jnp.float32),
        grid_spec=pltpu.PrefetchScalarGridSpec(
            num_scalar_prefetch=0,
            grid=grid,
            in_specs=[
                pl.BlockSpec((n_views, NB, K0), lambda b: (0, b, 0)),
                pl.BlockSpec((K0, K1), lambda b: (0, 0)),
                pl.BlockSpec((1, K1), lambda b: (0, 0)),
                pl.BlockSpec((K1, K2), lambda b: (0, 0)),
                pl.BlockSpec((1, K2), lambda b: (0, 0)),
            ],
            out_specs=pl.BlockSpec((NB, K2), lambda b: (b, 0)),
        ),
        compiler_params=pltpu.CompilerParams(
            dimension_semantics=("parallel",)),   # batch axis -> both TCs on v7x
    )(xw, w1m, b1v, w2m, b2v)

    # back to PyTorch's NCHW convention (wrapper-side layout plumbing)
    out_nhwc = out_flat.reshape(N, HO2, WO2, Cout)
    return jnp.transpose(out_nhwc, (0, 3, 1, 2))


# ----------------------------------------------------------------------------
# Pure-JAX reference (independent of the Toeplitz construction)
# ----------------------------------------------------------------------------
def down_block_reference(x_nchw, w1, b1, w2, b2, to_downsample=True):
    x = x_nchw
    if to_downsample:
        x = lax.reduce_window(x, -jnp.inf, lax.max,
                              window_dimensions=(1, 1, 2, 2),
                              window_strides=(1, 1, 2, 2),
                              padding="VALID")
    dn = ("NCHW", "HWIO", "NCHW")
    h = lax.conv_general_dilated(x, w1, (1, 1), "VALID", dimension_numbers=dn,
                                 precision=lax.Precision.HIGHEST)
    h = jnp.maximum(h + b1.reshape(1, -1, 1, 1), 0.0)
    o = lax.conv_general_dilated(h, w2, (1, 1), "VALID", dimension_numbers=dn,
                                 precision=lax.Precision.HIGHEST)
    o = jnp.maximum(o + b2.reshape(1, -1, 1, 1), 0.0)
    return o


if __name__ == "__main__":
    # DownBlock(in_channels=4, out_channels=8, to_downsample=True, bias=True)
    N, Cin, H, W = 2, 4, 16, 16
    Cout = 8

    key = jax.random.PRNGKey(0)
    kx, kw1, kb1, kw2, kb2 = jax.random.split(key, 5)

    x = jax.random.normal(kx, (N, Cin, H, W), dtype=jnp.float32)
    # Conv weights in HWIO layout (torch's (Cout,Cin,3,3) up to a transpose).
    w1 = 0.1 * jax.random.normal(kw1, (3, 3, Cin, Cout), dtype=jnp.float32)
    b1 = 0.1 * jax.random.normal(kb1, (Cout,), dtype=jnp.float32)
    w2 = 0.1 * jax.random.normal(kw2, (3, 3, Cout, Cout), dtype=jnp.float32)
    b2 = 0.1 * jax.random.normal(kb2, (Cout,), dtype=jnp.float32)

    out = down_block_pallas(x, w1, b1, w2, b2, to_downsample=True)
    out = jax.block_until_ready(out)

    ref = down_block_reference(x, w1, b1, w2, b2, to_downsample=True)
    assert out.shape == (N, Cout, (H // 2 - 2) - 2, (W // 2 - 2) - 2), out.shape
    if not jnp.allclose(out, ref, atol=2e-3, rtol=2e-3):
        raise AssertionError("Pallas DownBlock does not match JAX reference")

    print("KERNEL_OK")
</pallas_src>

<mosaic_0001>
module attributes {stable_mosaic.version = 11 : i64} {
  func.func @kernel(%arg0: i32, %arg1: memref<4x2x256xf32, #tpu.memory_space<vmem>>, %arg2: memref<256x288xf32, #tpu.memory_space<vmem>>, %arg3: memref<1x288xf32, #tpu.memory_space<vmem>>, %arg4: memref<288x128xf32, #tpu.memory_space<vmem>>, %arg5: memref<1x128xf32, #tpu.memory_space<vmem>>, %arg6: memref<2x128xf32, #tpu.memory_space<vmem>>) attributes {dimension_semantics = [#tpu.dimension_semantics<parallel>], iteration_bounds = array<i64: 1>, scalar_prefetch = 0 : i64, scratch_operands = 0 : i64, tpu.core_type = #tpu.core_type<tc>, window_params = [{transform_indices = @transform_0, window_bounds = array<i64: 4, 2, 256>}, {pipeline_mode = #tpu.pipeline_mode<synchronous>, transform_indices = @transform_1, window_bounds = array<i64: 256, 288>}, {pipeline_mode = #tpu.pipeline_mode<synchronous>, transform_indices = @transform_2, window_bounds = array<i64: 1, 288>}, {pipeline_mode = #tpu.pipeline_mode<synchronous>, transform_indices = @transform_3, window_bounds = array<i64: 288, 128>}, {pipeline_mode = #tpu.pipeline_mode<synchronous>, transform_indices = @transform_4, window_bounds = array<i64: 1, 128>}, {transform_indices = @transform_5, window_bounds = array<i64: 2, 128>}]} {
    %c0 = arith.constant 0 : index
    %c0_0 = arith.constant 0 : index
    %c0_1 = arith.constant 0 : index
    %0 = vector.load %arg1[%c0, %c0_0, %c0_1] : memref<4x2x256xf32, #tpu.memory_space<vmem>>, vector<1x2x256xf32>
    %1 = vector.shape_cast %0 : vector<1x2x256xf32> to vector<2x256xf32>
    %c1 = arith.constant 1 : index
    %c0_2 = arith.constant 0 : index
    %c0_3 = arith.constant 0 : index
    %2 = vector.load %arg1[%c1, %c0_2, %c0_3] : memref<4x2x256xf32, #tpu.memory_space<vmem>>, vector<1x2x256xf32>
    %3 = vector.shape_cast %2 : vector<1x2x256xf32> to vector<2x256xf32>
    %4 = arith.maximumf %1, %3 : vector<2x256xf32>
    %c2 = arith.constant 2 : index
    %c0_4 = arith.constant 0 : index
    %c0_5 = arith.constant 0 : index
    %5 = vector.load %arg1[%c2, %c0_4, %c0_5] : memref<4x2x256xf32, #tpu.memory_space<vmem>>, vector<1x2x256xf32>
    %6 = vector.shape_cast %5 : vector<1x2x256xf32> to vector<2x256xf32>
    %c3 = arith.constant 3 : index
    %c0_6 = arith.constant 0 : index
    %c0_7 = arith.constant 0 : index
    %7 = vector.load %arg1[%c3, %c0_6, %c0_7] : memref<4x2x256xf32, #tpu.memory_space<vmem>>, vector<1x2x256xf32>
    %8 = vector.shape_cast %7 : vector<1x2x256xf32> to vector<2x256xf32>
    %9 = arith.maximumf %6, %8 : vector<2x256xf32>
    %10 = arith.maximumf %4, %9 : vector<2x256xf32>
    %c0_8 = arith.constant 0 : index
    %c0_9 = arith.constant 0 : index
    %11 = vector.load %arg2[%c0_8, %c0_9] : memref<256x288xf32, #tpu.memory_space<vmem>>, vector<256x288xf32>
    %cst = arith.constant dense<0.000000e+00> : vector<2x288xf32>
    %12 = tpu.matmul %10, %11, %cst {dimension_numbers = #tpu.dot_dimension_numbers<[1], [0], [0], [1], [0, 0, 1, 1], [], []>} : vector<2x256xf32>, vector<256x288xf32>, vector<2x288xf32> -> vector<2x288xf32>
    %c0_10 = arith.constant 0 : index
    %c0_11 = arith.constant 0 : index
    %13 = vector.load %arg3[%c0_10, %c0_11] : memref<1x288xf32, #tpu.memory_space<vmem>>, vector<1x288xf32>
    %14 = vector.broadcast %13 : vector<1x288xf32> to vector<2x288xf32>
    %15 = arith.addf %12, %14 : vector<2x288xf32>
    %cst_12 = arith.constant 0.000000e+00 : f32
    %16 = vector.broadcast %cst_12 : f32 to vector<2x288xf32>
    %17 = arith.maximumf %15, %16 : vector<2x288xf32>
    %c0_13 = arith.constant 0 : index
    %c0_14 = arith.constant 0 : index
    %18 = vector.load %arg4[%c0_13, %c0_14] : memref<288x128xf32, #tpu.memory_space<vmem>>, vector<288x128xf32>
    %cst_15 = arith.constant dense<0.000000e+00> : vector<2x128xf32>
    %19 = tpu.matmul %17, %18, %cst_15 {dimension_numbers = #tpu.dot_dimension_numbers<[1], [0], [0], [1], [0, 0, 1, 1], [], []>} : vector<2x288xf32>, vector<288x128xf32>, vector<2x128xf32> -> vector<2x128xf32>
    %c0_16 = arith.constant 0 : index
    %c0_17 = arith.constant 0 : index
    %20 = vector.load %arg5[%c0_16, %c0_17] : memref<1x128xf32, #tpu.memory_space<vmem>>, vector<1x128xf32>
    %21 = vector.broadcast %20 : vector<1x128xf32> to vector<2x128xf32>
    %22 = arith.addf %19, %21 : vector<2x128xf32>
    %cst_18 = arith.constant 0.000000e+00 : f32
    %23 = vector.broadcast %cst_18 : f32 to vector<2x128xf32>
    %24 = arith.maximumf %22, %23 : vector<2x128xf32>
    %c0_19 = arith.constant 0 : index
    %c0_20 = arith.constant 0 : index
    %25 = vector.load %arg6[%c0_19, %c0_20] : memref<2x128xf32, #tpu.memory_space<vmem>>, vector<2x128xf32>
    tpu.vector_store %arg6[%c0_19, %c0_20], %24 {strides = array<i32>} : memref<2x128xf32, #tpu.memory_space<vmem>>, vector<2x128xf32>,
    return
  }
  func.func @transform_0(%arg0: i32) -> (i32, i32, i32) {
    %c0_i32 = arith.constant 0 : i32
    %c0_i32_0 = arith.constant 0 : i32
    %c0_i32_1 = arith.constant 0 : i32
    return %c0_i32, %arg0, %c0_i32_0 : i32, i32, i32
  }
  func.func @transform_1(%arg0: i32) -> (i32, i32) {
    %c0_i32 = arith.constant 0 : i32
    %c0_i32_0 = arith.constant 0 : i32
    %c0_i32_1 = arith.constant 0 : i32
    return %c0_i32, %c0_i32_0 : i32, i32
  }
  func.func @transform_2(%arg0: i32) -> (i32, i32) {
    %c0_i32 = arith.constant 0 : i32
    %c0_i32_0 = arith.constant 0 : i32
    %c0_i32_1 = arith.constant 0 : i32
    return %c0_i32, %c0_i32_0 : i32, i32
  }
  func.func @transform_3(%arg0: i32) -> (i32, i32) {
    %c0_i32 = arith.constant 0 : i32
    %c0_i32_0 = arith.constant 0 : i32
    %c0_i32_1 = arith.constant 0 : i32
    return %c0_i32, %c0_i32_0 : i32, i32
  }
  func.func @transform_4(%arg0: i32) -> (i32, i32) {
    %c0_i32 = arith.constant 0 : i32
    %c0_i32_0 = arith.constant 0 : i32
    %c0_i32_1 = arith.constant 0 : i32
    return %c0_i32, %c0_i32_0 : i32, i32
  }
  func.func @transform_5(%arg0: i32) -> (i32, i32) {
    %c0_i32 = arith.constant 0 : i32
    %c0_i32_0 = arith.constant 0 : i32
    return %arg0, %c0_i32 : i32, i32
  }
}

</mosaic_0001>

<llo_original>
// kernel: tile.13
$region0: #{tile.13}
  #allocation0 [shape = 's32[1]{0}', space=sflag, size = 0x4, scoped, tag = 'scoped memory for tile.13']
  %s0 = inlined_call_operand.vmem [shape: f32[8], index: 0, kind: input, shape index: {}]
  %s1 = inlined_call_operand.vmem [shape: f32[36,8], index: 1, kind: output, shape index: {}]
  // Predicated region
  $region2: #{tile.13} parent=0 // pred_check
    _
  $region3: #{tile.13} parent=0 // pred_check_branch
    %3 = sbr.rel (0) target = $region5
  $region4: #{tile.13} parent=0 // pred_region
    _
  $region5: #{tile.13} parent=0 // pred_fallthru
    _
  %v4 = vld [vmem:[%s0] ss:$0 sm:$0xff]
  %5 = vst [vmem:[%s1] sm:$0xff] %v4
  %s6 = scalar_lea.vmem %s1, 8
  %7 = vst [vmem:[%s6] sm:$0xff] %v4
  %s8 = scalar_lea.vmem %s1, 16
  %9 = vst [vmem:[%s8] sm:$0xff] %v4
  %s10 = scalar_lea.vmem %s1, 24
  %11 = vst [vmem:[%s10] sm:$0xff] %v4
  %s12 = scalar_lea.vmem %s1, 32
  %13 = vst [vmem:[%s12] sm:$0xff] %v4

// kernel: tile.14
$region0: #{tile.14}
  %s0 = inlined_call_operand.vmem [shape: f32[36,8], index: 0, kind: input, shape index: {}]
  %s1 = inlined_call_operand.vmem [shape: f32[1,288], index: 1, kind: output, shape index: {}]
  $region1: #{tile.14} parent=0
    #allocation0 [shape = 'u8[12288]{0}', space=vmem, size = 0x3000, scoped, tag = 'scoped mem for output reshape']
    %s2 = smov 3
    %v3 = vld [vmem:[%s0] ss:$16 sm:%s2]
    %s4 = scalar_lea.vmem %s0, 30
    %v5 = vld [vmem:[%s4] sm:$0x4]
    %vm6 = vcmask 1042434
    %v7 = vsel %vm6, %v5, %v3
    %vm8 = vcmask 64512
    %9 = vst.msk [vmem:[#allocation0] ss:$8 sm:$0x7] %vm8, %v7
    %s10 = scalar_lea.vmem %s0, 15
    %s11 = smov 3
    %v12 = vld [vmem:[%s10] ss:$16 sm:%s11]
    %13 = vrot.lane.b32.xlu0 %v12, 120
    %v14 = vpop.permute.xlu0 %13
    %vm15 = vcmask 1048512
    %16 = vst.msk [vmem:[#allocation0] ss:$8 sm:$0x3] %vm15, %v14
    %s17 = scalar_lea.vmem %s0, 14
    %s18 = smov 3
    %v19 = vld [vmem:[%s17] ss:$16 sm:%s18]
    %20 = vrot.lane.b32.xlu0 %v19, 112
    %v21 = vpop.permute.xlu0 %20
    %vm22 = vcmask 982912
    %23 = vst.msk [vmem:[#allocation0] ss:$8 sm:$0x3] %vm22, %v21
    %s24 = scalar_lea.vmem %s0, 13
    %s25 = smov 3
    %v26 = vld [vmem:[%s24] ss:$16 sm:%s25]
    %27 = vrot.lane.b32.xlu0 %v26, 104
    %v28 = vpop.permute.xlu0 %27
    %vm29 = vcmask 917312
    %30 = vst.msk [vmem:[#allocation0] ss:$8 sm:$0x3] %vm29, %v28
    %s31 = scalar_lea.vmem %s0, 12
    %s32 = smov 3
    %v33 = vld [vmem:[%s31] ss:$16 sm:%s32]
    %34 = vrot.lane.b32.xlu0 %v33, 96
    %v35 = vpop.permute.xlu0 %34
    %vm36 = vcmask 851712
    %37 = vst.msk [vmem:[#allocation0] ss:$8 sm:$0x3] %vm36, %v35
    %s38 = scalar_lea.vmem %s0, 11
    %s39 = smov 3
    %v40 = vld [vmem:[%s38] ss:$16 sm:%s39]
    %41 = vrot.lane.b32.xlu0 %v40, 88
    %v42 = vpop.permute.xlu0 %41
    %vm43 = vcmask 786112
    %44 = vst.msk [vmem:[#allocation0] ss:$8 sm:$0x3] %vm43, %v42
    %s45 = scalar_lea.vmem %s0, 10
    %s46 = smov 3
    %v47 = vld [vmem:[%s45] ss:$16 sm:%s46]
    %48 = vrot.lane.b32.xlu0 %v47, 80
    %v49 = vpop.permute.xlu0 %48
    %vm50 = vcmask 720512
    %51 = vst.msk [vmem:[#allocation0] ss:$8 sm:$0x3] %vm50, %v49
    %s52 = scalar_lea.vmem %s0, 9
    %s53 = smov 3
    %v54 = vld [vmem:[%s52] ss:$16 sm:%s53]
    %55 = vrot.lane.b32.xlu0 %v54, 72
    %v56 = vpop.permute.xlu0 %55
    %vm57 = vcmask 654912
    %58 = vst.msk [vmem:[#allocation0] ss:$8 sm:$0x3] %vm57, %v56
    %s59 = scalar_lea.vmem %s0, 8
    %s60 = smov 3
    %v61 = vld [vmem:[%s59] ss:$16 sm:%s60]
    %62 = vrot.lane.b32.xlu0 %v61, 64
    %v63 = vpop.permute.xlu0 %62
    %vm64 = vcmask 589312
    %65 = vst.msk [vmem:[#allocation0] ss:$8 sm:$0x3] %vm64, %v63
    %s66 = scalar_lea.vmem %s0, 7
    %s67 = smov 3
    %v68 = vld [vmem:[%s66] ss:$16 sm:%s67]
    %69 = vrot.lane.b32.xlu0 %v68, 56
    %v70 = vpop.permute.xlu0 %69
    %vm71 = vcmask 523712
    %72 = vst.msk [vmem:[#allocation0] ss:$8 sm:$0x3] %vm71, %v70
    %s73 = scalar_lea.vmem %s0, 6
    %s74 = smov 3
    %v75 = vld [vmem:[%s73] ss:$16 sm:%s74]
    %76 = vrot.lane.b32.xlu0 %v75, 48
    %v77 = vpop.permute.xlu0 %76
    %vm78 = vcmask 458112
    %79 = vst.msk [vmem:[#allocation0] ss:$8 sm:$0x3] %vm78, %v77
    %s80 = scalar_lea.vmem %s0, 5
    %s81 = smov 3
    %v82 = vld [vmem:[%s80] ss:$16 sm:%s81]
    %83 = vrot.lane.b32.xlu0 %v82, 40
    %v84 = vpop.permute.xlu0 %83
    %vm85 = vcmask 392512
    %86 = vst.msk [vmem:[#allocation0] ss:$8 sm:$0x3] %vm85, %v84
    %s87 = scalar_lea.vmem %s0, 4
    %s88 = smov 3
    %v89 = vld [vmem:[%s87] ss:$16 sm:%s88]
    %90 = vrot.lane.b32.xlu0 %v89, 32
    %v91 = vpop.permute.xlu0 %90
    %vm92 = vcmask 326912
    %93 = vst.msk [vmem:[#allocation0] ss:$8 sm:$0x3] %vm92, %v91
    %s94 = scalar_lea.vmem %s0, 3
    %s95 = smov 3
    %v96 = vld [vmem:[%s94] ss:$16 sm:%s95]
    %s97 = scalar_lea.vmem %s0, 33
    %v98 = vld [vmem:[%s97] sm:$0x4]
    %vm99 = vcmask 1042434
    %v100 = vsel %vm99, %v98, %v96
    %101 = vrot.lane.b32.xlu0 %v100, 24
    %v102 = vpop.permute.xlu0 %101
    %vm103 = vcmask 261312
    %104 = vst.msk [vmem:[#allocation0] ss:$8 sm:$0x7] %vm103, %v102
    %s105 = scalar_lea.vmem %s0, 2
    %s106 = smov 3
    %v107 = vld [vmem:[%s105] ss:$16 sm:%s106]
    %s108 = scalar_lea.vmem %s0, 32
    %v109 = vld [vmem:[%s108] sm:$0x4]
    %vm110 = vcmask 1042434
    %v111 = vsel %vm110, %v109, %v107
    %112 = vrot.lane.b32.xlu0 %v111, 16
    %v113 = vpop.permute.xlu0 %112
    %vm114 = vcmask 195712
    %115 = vst.msk [vmem:[#allocation0] ss:$8 sm:$0x7] %vm114, %v113
    %s116 = scalar_lea.vmem %s0, 1
    %s117 = smov 3
    %v118 = vld [vmem:[%s116] ss:$16 sm:%s117]
    %s119 = scalar_lea.vmem %s0, 31
    %v120 = vld [vmem:[%s119] sm:$0x4]
    %vm121 = vcmask 1042434
    %v122 = vsel %vm121, %v120, %v118
    %123 = vrot.lane.b32.xlu0 %v122, 8
    %v124 = vpop.permute.xlu0 %123
    %vm125 = vcmask 130112
    %126 = vst.msk [vmem:[#allocation0] ss:$8 sm:$0x7] %vm125, %v124
    %s128 = sshll.u32 1, 1
    %s129 = ssub.s32 %s128, 1
    %v131 = vld [vmem:[#allocation0] sm:%s129]
    %s132 = sshll.u32 1, 1
    %s133 = ssub.s32 %s132, 1
    %134 = vst [vmem:[%s1] sm:%s133] %v131
    %s135 = scalar_lea.vmem [#allocation0], 8
    %v136 = vld [vmem:[%s135] sm:%s129]
    %s137 = sshll.u32 1, 1
    %s138 = ssub.s32 %s137, 1
    %s139 = scalar_lea.vmem %s1, 1
    %140 = vst [vmem:[%s139] sm:%s138] %v136
    %s141 = scalar_lea.vmem [#allocation0], 16
    %v142 = vld [vmem:[%s141] sm:%s129]
    %s143 = sshll.u32 1, 1
    %s144 = ssub.s32 %s143, 1
    %s145 = smul.addr 1, 2
    %s146 = scalar_lea.vmem %s1, %s145
    %147 = vst [vmem:[%s146] sm:%s144] %v142

// kernel: tile.18
$region0: #{tile.18}
  #allocation0 [shape = 's32[1]{0}', space=sflag, size = 0x4, scoped, tag = 'scoped memory for tile.18']
  %s0 = inlined_call_operand.vmem [shape: f32[8], index: 0, kind: input, shape index: {}]
  %s1 = inlined_call_operand.vmem [shape: f32[16,8], index: 1, kind: output, shape index: {}]
  // Predicated region
  $region2: #{tile.18} parent=0 // pred_check
    _
  $region3: #{tile.18} parent=0 // pred_check_branch
    %3 = sbr.rel (0) target = $region5
  $region4: #{tile.18} parent=0 // pred_region
    _
  $region5: #{tile.18} parent=0 // pred_fallthru
    _
  %v4 = vld [vmem:[%s0] ss:$0 sm:$0xff]
  %5 = vst [vmem:[%s1] sm:$0xff] %v4
  %s6 = scalar_lea.vmem %s1, 8
  %7 = vst [vmem:[%s6] sm:$0xff] %v4

// kernel: tile.19
$region0: #{tile.19}
  %s0 = inlined_call_operand.vmem [shape: f32[16,8], index: 0, kind: input, shape index: {}]
  %s1 = inlined_call_operand.vmem [shape: f32[1,128], index: 1, kind: output, shape index: {}]
  $region1: #{tile.19} parent=0
    #allocation0 [shape = 'u8[4096]{0}', space=vmem, size = 0x1000, scoped, tag = 'scoped mem for output reshape']
    %v2 = vld [vmem:[%s0] sm:$0x1]
    %vm3 = vcmask 64512
    %4 = vst.msk [vmem:[#allocation0] sm:$0x1] %vm3, %v2
    %s5 = scalar_lea.vmem %s0, 15
    %v6 = vld [vmem:[%s5] sm:$0x1]
    %7 = vrot.lane.b32.xlu0 %v6, 120
    %v8 = vpop.permute.xlu0 %7
    %vm9 = vcmask 1048512
    %10 = vst.msk [vmem:[#allocation0] sm:$0x1] %vm9, %v8
    %s11 = scalar_lea.vmem %s0, 14
    %v12 = vld [vmem:[%s11] sm:$0x1]
    %13 = vrot.lane.b32.xlu0 %v12, 112
    %v14 = vpop.permute.xlu0 %13
    %vm15 = vcmask 982912
    %16 = vst.msk [vmem:[#allocation0] sm:$0x1] %vm15, %v14
    %s17 = scalar_lea.vmem %s0, 13
    %v18 = vld [vmem:[%s17] sm:$0x1]
    %19 = vrot.lane.b32.xlu0 %v18, 104
    %v20 = vpop.permute.xlu0 %19
    %vm21 = vcmask 917312
    %22 = vst.msk [vmem:[#allocation0] sm:$0x1] %vm21, %v20
    %s23 = scalar_lea.vmem %s0, 12
    %v24 = vld [vmem:[%s23] sm:$0x1]
    %25 = vrot.lane.b32.xlu0 %v24, 96
    %v26 = vpop.permute.xlu0 %25
    %vm27 = vcmask 851712
    %28 = vst.msk [vmem:[#allocation0] sm:$0x1] %vm27, %v26
    %s29 = scalar_lea.vmem %s0, 11
    %v30 = vld [vmem:[%s29] sm:$0x1]
    %31 = vrot.lane.b32.xlu0 %v30, 88
    %v32 = vpop.permute.xlu0 %31
    %vm33 = vcmask 786112
    %34 = vst.msk [vmem:[#allocation0] sm:$0x1] %vm33, %v32
    %s35 = scalar_lea.vmem %s0, 10
    %v36 = vld [vmem:[%s35] sm:$0x1]
    %37 = vrot.lane.b32.xlu0 %v36, 80
    %v38 = vpop.permute.xlu0 %37
    %vm39 = vcmask 720512
    %40 = vst.msk [vmem:[#allocation0] sm:$0x1] %vm39, %v38
    %s41 = scalar_lea.vmem %s0, 9
    %v42 = vld [vmem:[%s41] sm:$0x1]
    %43 = vrot.lane.b32.xlu0 %v42, 72
    %v44 = vpop.permute.xlu0 %43
    %vm45 = vcmask 654912
    %46 = vst.msk [vmem:[#allocation0] sm:$0x1] %vm45, %v44
    %s47 = scalar_lea.vmem %s0, 8
    %v48 = vld [vmem:[%s47] sm:$0x1]
    %49 = vrot.lane.b32.xlu0 %v48, 64
    %v50 = vpop.permute.xlu0 %49
    %vm51 = vcmask 589312
    %52 = vst.msk [vmem:[#allocation0] sm:$0x1] %vm51, %v50
    %s53 = scalar_lea.vmem %s0, 7
    %v54 = vld [vmem:[%s53] sm:$0x1]
    %55 = vrot.lane.b32.xlu0 %v54, 56
    %v56 = vpop.permute.xlu0 %55
    %vm57 = vcmask 523712
    %58 = vst.msk [vmem:[#allocation0] sm:$0x1] %vm57, %v56
    %s59 = scalar_lea.vmem %s0, 6
    %v60 = vld [vmem:[%s59] sm:$0x1]
    %61 = vrot.lane.b32.xlu0 %v60, 48
    %v62 = vpop.permute.xlu0 %61
    %vm63 = vcmask 458112
    %64 = vst.msk [vmem:[#allocation0] sm:$0x1] %vm63, %v62
    %s65 = scalar_lea.vmem %s0, 5
    %v66 = vld [vmem:[%s65] sm:$0x1]
    %67 = vrot.lane.b32.xlu0 %v66, 40
    %v68 = vpop.permute.xlu0 %67
    %vm69 = vcmask 392512
    %70 = vst.msk [vmem:[#allocation0] sm:$0x1] %vm69, %v68
    %s71 = scalar_lea.vmem %s0, 4
    %v72 = vld [vmem:[%s71] sm:$0x1]
    %73 = vrot.lane.b32.xlu0 %v72, 32
    %v74 = vpop.permute.xlu0 %73
    %vm75 = vcmask 326912
    %76 = vst.msk [vmem:[#allocation0] sm:$0x1] %vm75, %v74
    %s77 = scalar_lea.vmem %s0, 3
    %v78 = vld [vmem:[%s77] sm:$0x1]
    %79 = vrot.lane.b32.xlu0 %v78, 24
    %v80 = vpop.permute.xlu0 %79
    %vm81 = vcmask 261312
    %82 = vst.msk [vmem:[#allocation0] sm:$0x1] %vm81, %v80
    %s83 = scalar_lea.vmem %s0, 2
    %v84 = vld [vmem:[%s83] sm:$0x1]
    %85 = vrot.lane.b32.xlu0 %v84, 16
    %v86 = vpop.permute.xlu0 %85
    %vm87 = vcmask 195712
    %88 = vst.msk [vmem:[#allocation0] sm:$0x1] %vm87, %v86
    %s89 = scalar_lea.vmem %s0, 1
    %v90 = vld [vmem:[%s89] sm:$0x1]
    %91 = vrot.lane.b32.xlu0 %v90, 8
    %v92 = vpop.permute.xlu0 %91
    %vm93 = vcmask 130112
    %94 = vst.msk [vmem:[#allocation0] sm:$0x1] %vm93, %v92
    %s96 = sshll.u32 1, 1
    %s97 = ssub.s32 %s96, 1
    %v99 = vld [vmem:[#allocation0] sm:%s97]
    %s100 = sshll.u32 1, 1
    %s101 = ssub.s32 %s100, 1
    %102 = vst [vmem:[%s1] sm:%s101] %v99

// kernel: down_block_pallas.1
$region0: #{down_block_pallas.1}
  #allocation0 [shape = 'u32[]', space=smem, size = 0x4, offset = 0x4, fixed_abs, tag = 'smem constant byte address 0x4 - core index']
  #allocation1 [shape = 'u32[144,128]{1,0:T(1,128)}', space=vmem, size = 0x12000, scoped, tag = 'internal scratch']
  %s0 = inlined_call_operand.vmem [shape: f32[4,2,256], index: 0, kind: input, shape index: {}]
  %s1 = inlined_call_operand.vmem [shape: f32[256,288], index: 1, kind: input, shape index: {}]
  %s2 = inlined_call_operand.vmem [shape: f32[1,288], index: 2, kind: input, shape index: {}]
  %s3 = inlined_call_operand.vmem [shape: f32[288,128], index: 3, kind: input, shape index: {}]
  %s4 = inlined_call_operand.vmem [shape: f32[1,128], index: 4, kind: input, shape index: {}]
  %s5 = inlined_call_operand.vmem [shape: f32[2,128], index: 5, kind: output, shape index: {}]
  %s6 = sld [smem:[#allocation0]]
  $region30: #{down_block_pallas.1} parent=0
    _
  %s8 = ssub.s32 1, %s6
  %s9 = scalar_select 0, %s8, %s6
  // Predicated region
  $region2: #{down_block_pallas.1} parent=0 // pred_check
    _
  $region3: #{down_block_pallas.1} parent=0 // pred_check_branch
    %11 = sbr.rel (0) target = $region5
  $region4: #{down_block_pallas.1} parent=0 // pred_region
    _
  $region5: #{down_block_pallas.1} parent=0 // pred_fallthru
    _
  // Predicated region
  $region6: #{down_block_pallas.1} parent=0 // pred_check
    _
  $region7: #{down_block_pallas.1} parent=0 // pred_check_branch
    %13 = sbr.rel (0) target = $region9
  $region8: #{down_block_pallas.1} parent=0 // pred_region
    _
  $region9: #{down_block_pallas.1} parent=0 // pred_fallthru
    _
  // Predicated region
  $region10: #{down_block_pallas.1} parent=0 // pred_check
    _
  $region11: #{down_block_pallas.1} parent=0 // pred_check_branch
    %15 = sbr.rel (0) target = $region13
  $region12: #{down_block_pallas.1} parent=0 // pred_region
    _
  $region13: #{down_block_pallas.1} parent=0 // pred_fallthru
    _
  // Predicated region
  $region14: #{down_block_pallas.1} parent=0 // pred_check
    _
  $region15: #{down_block_pallas.1} parent=0 // pred_check_branch
    %17 = sbr.rel (0) target = $region17
  $region16: #{down_block_pallas.1} parent=0 // pred_region
    _
  $region17: #{down_block_pallas.1} parent=0 // pred_fallthru
    _
  // Predicated region
  $region18: #{down_block_pallas.1} parent=0 // pred_check
    _
  $region19: #{down_block_pallas.1} parent=0 // pred_check_branch
    %19 = sbr.rel (0) target = $region21
  $region20: #{down_block_pallas.1} parent=0 // pred_region
    _
  $region21: #{down_block_pallas.1} parent=0 // pred_fallthru
    _
  %v20 = vld [vmem:[%s0] sm:$0xf]
  %s21 = scalar_lea.vmem %s0, 4
  %v22 = vld [vmem:[%s21] sm:$0xf]
  %v23 = vmax.f32 %v20, %v22
  %s24 = scalar_lea.vmem %s0, 8
  %v25 = vld [vmem:[%s24] sm:$0xf]
  %s26 = scalar_lea.vmem %s0, 12
  %v27 = vld [vmem:[%s26] sm:$0xf]
  %v28 = vmax.f32 %v25, %v27
  %v29 = vmax.f32 %v23, %v28
  %v30 = vld [vmem:[%s1] sm:$0xff]
  %v31 = vld [vmem:[%s1 + $0x8] sm:$0xff]
  %v32 = vld [vmem:[%s1 + $0x10] sm:$0xff]
  %v33 = vld [vmem:[%s1 + $0x18] sm:$0xff]
  %v34 = vld [vmem:[%s1 + $0x20] sm:$0xff]
  %v35 = vld [vmem:[%s1 + $0x28] sm:$0xff]
  %v36 = vld [vmem:[%s1 + $0x30] sm:$0xff]
  %v37 = vld [vmem:[%s1 + $0x38] sm:$0xff]
  %v38 = vld [vmem:[%s1 + $0x40] sm:$0xff]
  %v39 = vld [vmem:[%s1 + $0x48] sm:$0xff]
  %v40 = vld [vmem:[%s1 + $0x50] sm:$0xff]
  %v41 = vld [vmem:[%s1 + $0x58] sm:$0xff]
  %v42 = vld [vmem:[%s1 + $0x60] sm:$0xff]
  %v43 = vld [vmem:[%s1 + $0x68] sm:$0xff]
  %v44 = vld [vmem:[%s1 + $0x70] sm:$0xff]
  %v45 = vld [vmem:[%s1 + $0x78] sm:$0xff]
  %v46 = vld [vmem:[%s1 + $0x80] sm:$0xff]
  %v47 = vld [vmem:[%s1 + $0x88] sm:$0xff]
  %v48 = vld [vmem:[%s1 + $0x90] sm:$0xff]
  %v49 = vld [vmem:[%s1 + $0x98] sm:$0xff]
  %v50 = vld [vmem:[%s1 + $0xa0] sm:$0xff]
  %v51 = vld [vmem:[%s1 + $0xa8] sm:$0xff]
  %v52 = vld [vmem:[%s1 + $0xb0] sm:$0xff]
  %v53 = vld [vmem:[%s1 + $0xb8] sm:$0xff]
  %v54 = vld [vmem:[%s1 + $0xc0] sm:$0xff]
  %v55 = vld [vmem:[%s1 + $0xc8] sm:$0xff]
  %v56 = vld [vmem:[%s1 + $0xd0] sm:$0xff]
  %v57 = vld [vmem:[%s1 + $0xd8] sm:$0xff]
  %v58 = vld [vmem:[%s1 + $0xe0] sm:$0xff]
  %v59 = vld [vmem:[%s1 + $0xe8] sm:$0xff]
  %v60 = vld [vmem:[%s1 + $0xf0] sm:$0xff]
  %v61 = vld [vmem:[%s1 + $0xf8] sm:$0xff]
  %v62 = vld [vmem:[%s1 + $0x100] sm:$0xff]
  %v63 = vld [vmem:[%s1 + $0x108] sm:$0xff]
  %v64 = vld [vmem:[%s1 + $0x110] sm:$0xff]
  %v65 = vld [vmem:[%s1 + $0x118] sm:$0xff]
  %v66 = vld [vmem:[%s1 + $0x120] sm:$0xff]
  %v67 = vld [vmem:[%s1 + $0x128] sm:$0xff]
  %v68 = vld [vmem:[%s1 + $0x130] sm:$0xff]
  %v69 = vld [vmem:[%s1 + $0x138] sm:$0xff]
  %v70 = vld [vmem:[%s1 + $0x140] sm:$0xff]
  %v71 = vld [vmem:[%s1 + $0x148] sm:$0xff]
  %v72 = vld [vmem:[%s1 + $0x150] sm:$0xff]
  %v73 = vld [vmem:[%s1 + $0x158] sm:$0xff]
  %v74 = vld [vmem:[%s1 + $0x160] sm:$0xff]
  %v75 = vld [vmem:[%s1 + $0x168] sm:$0xff]
  %v76 = vld [vmem:[%s1 + $0x170] sm:$0xff]
  %v77 = vld [vmem:[%s1 + $0x178] sm:$0xff]
  %v78 = vld [vmem:[%s1 + $0x180] sm:$0xff]
  %v79 = vld [vmem:[%s1 + $0x188] sm:$0xff]
  %v80 = vld [vmem:[%s1 + $0x190] sm:$0xff]
  %v81 = vld [vmem:[%s1 + $0x198] sm:$0xff]
  %v82 = vld [vmem:[%s1 + $0x1a0] sm:$0xff]
  %v83 = vld [vmem:[%s1 + $0x1a8] sm:$0xff]
  %v84 = vld [vmem:[%s1 + $0x1b0] sm:$0xff]
  %v85 = vld [vmem:[%s1 + $0x1b8] sm:$0xff]
  %v86 = vld [vmem:[%s1 + $0x1c0] sm:$0xff]
  %v87 = vld [vmem:[%s1 + $0x1c8] sm:$0xff]
  %v88 = vld [vmem:[%s1 + $0x1d0] sm:$0xff]
  %v89 = vld [vmem:[%s1 + $0x1d8] sm:$0xff]
  %v90 = vld [vmem:[%s1 + $0x1e0] sm:$0xff]
  %v91 = vld [vmem:[%s1 + $0x1e8] sm:$0xff]
  %v92 = vld [vmem:[%s1 + $0x1f0] sm:$0xff]
  %v93 = vld [vmem:[%s1 + $0x1f8] sm:$0xff]
  %v94 = vld [vmem:[%s1 + $0x200] sm:$0xff]
  %v95 = vld [vmem:[%s1 + $0x208] sm:$0xff]
  %v96 = vld [vmem:[%s1 + $0x210] sm:$0xff]
  %v97 = vld [vmem:[%s1 + $0x218] sm:$0xff]
  %v98 = vld [vmem:[%s1 + $0x220] sm:$0xff]
  %v99 = vld [vmem:[%s1 + $0x228] sm:$0xff]
  %v100 = vld [vmem:[%s1 + $0x230] sm:$0xff]
  %v101 = vld [vmem:[%s1 + $0x238] sm:$0xff]
  %v102 = vld [vmem:[%s1 + $0x240] sm:$0xff]
  %v103 = vld [vmem:[%s1 + $0x248] sm:$0xff]
  %v104 = vld [vmem:[%s1 + $0x250] sm:$0xff]
  %v105 = vld [vmem:[%s1 + $0x258] sm:$0xff]
  %v106 = vld [vmem:[%s1 + $0x260] sm:$0xff]
  %v107 = vld [vmem:[%s1 + $0x268] sm:$0xff]
  %v108 = vld [vmem:[%s1 + $0x270] sm:$0xff]
  %v109 = vld [vmem:[%s1 + $0x278] sm:$0xff]
  %v110 = vld [vmem:[%s1 + $0x280] sm:$0xff]
  %v111 = vld [vmem:[%s1 + $0x288] sm:$0xff]
  %v112 = vld [vmem:[%s1 + $0x290] sm:$0xff]
  %v113 = vld [vmem:[%s1 + $0x298] sm:$0xff]
  %v114 = vld [vmem:[%s1 + $0x2a0] sm:$0xff]
  %v115 = vld [vmem:[%s1 + $0x2a8] sm:$0xff]
  %v116 = vld [vmem:[%s1 + $0x2b0] sm:$0xff]
  %v117 = vld [vmem:[%s1 + $0x2b8] sm:$0xff]
  %v118 = vld [vmem:[%s1 + $0x2c0] sm:$0xff]
  %v119 = vld [vmem:[%s1 + $0x2c8] sm:$0xff]
  %v120 = vld [vmem:[%s1 + $0x2d0] sm:$0xff]
  %v121 = vld [vmem:[%s1 + $0x2d8] sm:$0xff]
  %v122 = vld [vmem:[%s1 + $0x2e0] sm:$0xff]
  %v123 = vld [vmem:[%s1 + $0x2e8] sm:$0xff]
  %v124 = vld [vmem:[%s1 + $0x2f0] sm:$0xff]
  %v125 = vld [vmem:[%s1 + $0x2f8] sm:$0xff]
  %v126 = vld [vmem:[%s2] sm:$0x7]
  %v128 = vlaneseq
  %v129 = vshrl.u32 %v128, 7
  %v130 = vsub.s32 0, %v129
  %v131 = vrot.slane %v126, %v130
  %v132 = vlaneseq
  %v133 = vshrl.u32 %v132, 7
  %v134 = vsub.s32 1, %v133
  %v135 = vrot.slane %v126, %v134
  %v136 = vlaneseq
  %v137 = vshrl.u32 %v136, 7
  %v138 = vsub.s32 2, %v137
  %v139 = vrot.slane %v126, %v138
  %v145 = vunpack.c.l.s4 1983009808
  %v146 = vunpack.c.0.s8 %v145
  %v147 = vlaneseq
  %v148 = vshrl.u32 %v147, 7
  %v149 = vsub.s32 %v146, %v148
  %v150 = vrot.slane %v29, %v149
  %v151 = vcombine.high %v150, %v150
  %154 = vmatprep.subr.mxu0 %v76
  %155 = vmatpush1.msra.mxu0 %v75
  %156 = vmatprep.subr.mxu0 %v73
  %157 = vmatpush1.msra.mxu0 %v72
  %158 = vmatprep.subr.mxu0 %v70
  %159 = vmatpush1.msra.mxu0 %v69
  %160 = vmatprep.subr.mxu0 %v67
  %161 = vmatpush1.msra.mxu0 %v66
  %162 = vmatprep.subr.mxu0 %v64
  %163 = vmatpush1.msra.mxu0 %v63
  %164 = vmatprep.subr.mxu0 %v61
  %165 = vmatpush1.msra.mxu0 %v60
  %166 = vmatprep.subr.mxu0 %v58
  %167 = vmatpush1.msra.mxu0 %v57
  %168 = vmatprep.subr.mxu0 %v55
  %169 = vmatpush1.msra.mxu0 %v54
  %170 = vmatprep.subr.mxu0 %v52
  %171 = vmatpush1.msra.mxu0 %v51
  %172 = vmatprep.subr.mxu0 %v49
  %173 = vmatpush1.msra.mxu0 %v48
  %174 = vmatprep.subr.mxu0 %v46
  %175 = vmatpush1.msra.mxu0 %v45
  %176 = vmatprep.subr.mxu0 %v43
  %177 = vmatpush1.msra.mxu0 %v42
  %178 = vmatprep.subr.mxu0 %v40
  %179 = vmatpush1.msra.mxu0 %v39
  %180 = vmatprep.subr.mxu0 %v37
  %181 = vmatpush1.msra.mxu0 %v36
  %182 = vmatprep.subr.mxu0 %v34
  %183 = vmatpush1.msra.mxu0 %v33
  %184 = vmatprep.subr.mxu0 %v31
  %185 = vmatpush1.msra.mxu0 %v30
  %186 = vmatprep.subr.mxu0 %v124
  %187 = vmatpush2.msra.mxu0 %v123
  %188 = vmatprep.subr.mxu0 %v121
  %189 = vmatpush2.msra.mxu0 %v120
  %190 = vmatprep.subr.mxu0 %v118
  %191 = vmatpush2.msra.mxu0 %v117
  %192 = vmatprep.subr.mxu0 %v115
  %193 = vmatpush2.msra.mxu0 %v114
  %194 = vmatprep.subr.mxu0 %v112
  %195 = vmatpush2.msra.mxu0 %v111
  %196 = vmatprep.subr.mxu0 %v109
  %197 = vmatpush2.msra.mxu0 %v108
  %198 = vmatprep.subr.mxu0 %v106
  %199 = vmatpush2.msra.mxu0 %v105
  %200 = vmatprep.subr.mxu0 %v103
  %201 = vmatpush2.msra.mxu0 %v102
  %202 = vmatprep.subr.mxu0 %v100
  %203 = vmatpush2.msra.mxu0 %v99
  %204 = vmatprep.subr.mxu0 %v97
  %205 = vmatpush2.msra.mxu0 %v96
  %206 = vmatprep.subr.mxu0 %v94
  %207 = vmatpush2.msra.mxu0 %v93
  %208 = vmatprep.subr.mxu0 %v91
  %209 = vmatpush2.msra.mxu0 %v90
  %210 = vmatprep.subr.mxu0 %v88
  %211 = vmatpush2.msra.mxu0 %v87
  %212 = vmatprep.subr.mxu0 %v85
  %213 = vmatpush2.msra.mxu0 %v84
  %214 = vmatprep.subr.mxu0 %v82
  %215 = vmatpush2.msra.mxu0 %v81
  %216 = vmatprep.subr.mxu0 %v79
  %217 = vmatpush2.msra.mxu0 %v78
  %218 = vmatprep.mubr.f32.mxu0 %v151
  %219 = vmatmul.mubr.f32.gmra.mxu0 %v150
  %v220 = vpop.f32.mrf.mxu0
  %v221 = vadd.f32 %v131, %v220
  %v222 = vpop.f32.mrf.mxu0
  %v223 = vadd.f32 %v135, %v222
  %224 = vdwg.mxu0
  %225 = vmatprep.subr.mxu0 0.0
  %226 = vmatpush1.msra.mxu0 %v77
  %227 = vmatprep.subr.mxu0 0.0
  %228 = vmatpush1.msra.mxu0 %v74
  %229 = vmatprep.subr.mxu0 0.0
  %230 = vmatpush1.msra.mxu0 %v71
  %231 = vmatprep.subr.mxu0 0.0
  %232 = vmatpush1.msra.mxu0 %v68
  %233 = vmatprep.subr.mxu0 0.0
  %234 = vmatpush1.msra.mxu0 %v65
  %235 = vmatprep.subr.mxu0 0.0
  %236 = vmatpush1.msra.mxu0 %v62
  %237 = vmatprep.subr.mxu0 0.0
  %238 = vmatpush1.msra.mxu0 %v59
  %239 = vmatprep.subr.mxu0 0.0
  %240 = vmatpush1.msra.mxu0 %v56
  %241 = vmatprep.subr.mxu0 0.0
  %242 = vmatpush1.msra.mxu0 %v53
  %243 = vmatprep.subr.mxu0 0.0
  %244 = vmatpush1.msra.mxu0 %v50
  %245 = vmatprep.subr.mxu0 0.0
  %246 = vmatpush1.msra.mxu0 %v47
  %247 = vmatprep.subr.mxu0 0.0
  %248 = vmatpush1.msra.mxu0 %v44
  %249 = vmatprep.subr.mxu0 0.0
  %250 = vmatpush1.msra.mxu0 %v41
  %251 = vmatprep.subr.mxu0 0.0
  %252 = vmatpush1.msra.mxu0 %v38
  %253 = vmatprep.subr.mxu0 0.0
  %254 = vmatpush1.msra.mxu0 %v35
  %255 = vmatprep.subr.mxu0 0.0
  %256 = vmatpush1.msra.mxu0 %v32
  %257 = vmatprep.subr.mxu0 0.0
  %258 = vmatpush2.msra.mxu0 %v125
  %259 = vmatprep.subr.mxu0 0.0
  %260 = vmatpush2.msra.mxu0 %v122
  %261 = vmatprep.subr.mxu0 0.0
  %262 = vmatpush2.msra.mxu0 %v119
  %263 = vmatprep.subr.mxu0 0.0
  %264 = vmatpush2.msra.mxu0 %v116
  %265 = vmatprep.subr.mxu0 0.0
  %266 = vmatpush2.msra.mxu0 %v113
  %267 = vmatprep.subr.mxu0 0.0
  %268 = vmatpush2.msra.mxu0 %v110
  %269 = vmatprep.subr.mxu0 0.0
  %270 = vmatpush2.msra.mxu0 %v107
  %271 = vmatprep.subr.mxu0 0.0
  %272 = vmatpush2.msra.mxu0 %v104
  %273 = vmatprep.subr.mxu0 0.0
  %274 = vmatpush2.msra.mxu0 %v101
  %275 = vmatprep.subr.mxu0 0.0
  %276 = vmatpush2.msra.mxu0 %v98
  %277 = vmatprep.subr.mxu0 0.0
  %278 = vmatpush2.msra.mxu0 %v95
  %279 = vmatprep.subr.mxu0 0.0
  %280 = vmatpush2.msra.mxu0 %v92
  %281 = vmatprep.subr.mxu0 0.0
  %282 = vmatpush2.msra.mxu0 %v89
  %283 = vmatprep.subr.mxu0 0.0
  %284 = vmatpush2.msra.mxu0 %v86
  %285 = vmatprep.subr.mxu0 0.0
  %286 = vmatpush2.msra.mxu0 %v83
  %287 = vmatprep.subr.mxu0 0.0
  %288 = vmatpush2.msra.mxu0 %v80
  %289 = vmatprep.mubr.f32.mxu0 %v151
  %290 = vmatmul.mubr.f32.gmra.mxu0 %v150
  %v291 = vpop.f32.mrf.mxu0
  %v292 = vadd.f32 %v139, %v291
  %v293 = vpop.f32.mrf.mxu0
  %294 = vdwg.mxu0
  %v295 = vmax.f32 %v221, 0.0
  %v296 = vmax.f32 %v223, 0.0
  %v297 = vmax.f32 %v292, 0.0
  %v298 = vld [vmem:[%s3] sm:$0xff]
  %v299 = vld [vmem:[%s3 + $0x8] sm:$0xff]
  %v300 = vld [vmem:[%s3 + $0x10] sm:$0xff]
  %v301 = vld [vmem:[%s3 + $0x18] sm:$0xff]
  %v302 = vld [vmem:[%s3 + $0x20] sm:$0xff]
  %v303 = vld [vmem:[%s3 + $0x28] sm:$0xff]
  %v304 = vld [vmem:[%s3 + $0x30] sm:$0xff]
  %v305 = vld [vmem:[%s3 + $0x38] sm:$0xff]
  %v306 = vld [vmem:[%s3 + $0x40] sm:$0xff]
  %v307 = vld [vmem:[%s3 + $0x48] sm:$0xff]
  %v308 = vld [vmem:[%s3 + $0x50] sm:$0xff]
  %v309 = vld [vmem:[%s3 + $0x58] sm:$0xff]
  %v310 = vld [vmem:[%s3 + $0x60] sm:$0xff]
  %v311 = vld [vmem:[%s3 + $0x68] sm:$0xff]
  %v312 = vld [vmem:[%s3 + $0x70] sm:$0xff]
  %v313 = vld [vmem:[%s3 + $0x78] sm:$0xff]
  %v314 = vld [vmem:[%s3 + $0x80] sm:$0xff]
  %v315 = vld [vmem:[%s3 + $0x88] sm:$0xff]
  %v316 = vld [vmem:[%s3 + $0x90] sm:$0xff]
  %v317 = vld [vmem:[%s3 + $0x98] sm:$0xff]
  %v318 = vld [vmem:[%s3 + $0xa0] sm:$0xff]
  %v319 = vld [vmem:[%s3 + $0xa8] sm:$0xff]
  %v320 = vld [vmem:[%s3 + $0xb0] sm:$0xff]
  %v321 = vld [vmem:[%s3 + $0xb8] sm:$0xff]
  %v322 = vld [vmem:[%s3 + $0xc0] sm:$0xff]
  %v323 = vld [vmem:[%s3 + $0xc8] sm:$0xff]
  %v324 = vld [vmem:[%s3 + $0xd0] sm:$0xff]
  %v325 = vld [vmem:[%s3 + $0xd8] sm:$0xff]
  %v326 = vld [vmem:[%s3 + $0xe0] sm:$0xff]
  %v327 = vld [vmem:[%s3 + $0xe8] sm:$0xff]
  %v328 = vld [vmem:[%s3 + $0xf0] sm:$0xff]
  %v329 = vld [vmem:[%s3 + $0xf8] sm:$0xff]
  %v330 = vld [vmem:[%s3 + $0x100] sm:$0xff]
  %v331 = vld [vmem:[%s3 + $0x108] sm:$0xff]
  %v332 = vld [vmem:[%s3 + $0x110] sm:$0xff]
  %v333 = vld [vmem:[%s3 + $0x118] sm:$0xff]
  %v334 = vld [vmem:[%s4] sm:$0x1]
  %v336 = vlaneseq
  %v337 = vshrl.u32 %v336, 7
  %v338 = vsub.s32 0, %v337
  %v339 = vrot.slane %v334, %v338
  %vm341 = vcmask 261120
  %v343 = vsel %vm341, %v297, 0
  %345 = vmatprep.subr.mxu0 0.0
  %346 = vmatpush1.msra.mxu0 %v313
  %347 = vmatprep.subr.mxu0 0.0
  %348 = vmatpush1.msra.mxu0 %v312
  %349 = vmatprep.subr.mxu0 0.0
  %350 = vmatpush1.msra.mxu0 %v311
  %351 = vmatprep.subr.mxu0 0.0
  %352 = vmatpush1.msra.mxu0 %v310
  %353 = vmatprep.subr.mxu0 0.0
  %354 = vmatpush1.msra.mxu0 %v309
  %355 = vmatprep.subr.mxu0 0.0
  %356 = vmatpush1.msra.mxu0 %v308
  %357 = vmatprep.subr.mxu0 0.0
  %358 = vmatpush1.msra.mxu0 %v307
  %359 = vmatprep.subr.mxu0 0.0
  %360 = vmatpush1.msra.mxu0 %v306
  %361 = vmatprep.subr.mxu0 0.0
  %362 = vmatpush1.msra.mxu0 %v305
  %363 = vmatprep.subr.mxu0 0.0
  %364 = vmatpush1.msra.mxu0 %v304
  %365 = vmatprep.subr.mxu0 0.0
  %366 = vmatpush1.msra.mxu0 %v303
  %367 = vmatprep.subr.mxu0 0.0
  %368 = vmatpush1.msra.mxu0 %v302
  %369 = vmatprep.subr.mxu0 0.0
  %370 = vmatpush1.msra.mxu0 %v301
  %371 = vmatprep.subr.mxu0 0.0
  %372 = vmatpush1.msra.mxu0 %v300
  %373 = vmatprep.subr.mxu0 0.0
  %374 = vmatpush1.msra.mxu0 %v299
  %375 = vmatprep.subr.mxu0 0.0
  %376 = vmatpush1.msra.mxu0 %v298
  %377 = vmatprep.subr.mxu0 0.0
  %378 = vmatpush2.msra.mxu0 %v329
  %379 = vmatprep.subr.mxu0 0.0
  %380 = vmatpush2.msra.mxu0 %v328
  %381 = vmatprep.subr.mxu0 0.0
  %382 = vmatpush2.msra.mxu0 %v327
  %383 = vmatprep.subr.mxu0 0.0
  %384 = vmatpush2.msra.mxu0 %v326
  %385 = vmatprep.subr.mxu0 0.0
  %386 = vmatpush2.msra.mxu0 %v325
  %387 = vmatprep.subr.mxu0 0.0
  %388 = vmatpush2.msra.mxu0 %v324
  %389 = vmatprep.subr.mxu0 0.0
  %390 = vmatpush2.msra.mxu0 %v323
  %391 = vmatprep.subr.mxu0 0.0
  %392 = vmatpush2.msra.mxu0 %v322
  %393 = vmatprep.subr.mxu0 0.0
  %394 = vmatpush2.msra.mxu0 %v321
  %395 = vmatprep.subr.mxu0 0.0
  %396 = vmatpush2.msra.mxu0 %v320
  %397 = vmatprep.subr.mxu0 0.0
  %398 = vmatpush2.msra.mxu0 %v319
  %399 = vmatprep.subr.mxu0 0.0
  %400 = vmatpush2.msra.mxu0 %v318
  %401 = vmatprep.subr.mxu0 0.0
  %402 = vmatpush2.msra.mxu0 %v317
  %403 = vmatprep.subr.mxu0 0.0
  %404 = vmatpush2.msra.mxu0 %v316
  %405 = vmatprep.subr.mxu0 0.0
  %406 = vmatpush2.msra.mxu0 %v315
  %407 = vmatprep.subr.mxu0 0.0
  %408 = vmatpush2.msra.mxu0 %v314
  %409 = vmatprep.mubr.f32.mxu0 %v296
  %410 = vmatmul.mubr.f32.gmra.mxu0 %v295
  %v411 = vpop.f32.mrf.mxu0
  %v412 = vadd.f32 %v339, %v411
  %v413 = vpop.f32.mrf.mxu0
  %414 = vdwg.mxu0
  %415 = vmatprep.subr.mxu0 0.0
  %416 = vmatpush1.msra.mxu0 0.0
  %417 = vmatprep.subr.mxu0 0.0
  %418 = vmatpush1.msra.mxu0 0.0
  %419 = vmatprep.subr.mxu0 0.0
  %420 = vmatpush1.msra.mxu0 0.0
  %421 = vmatprep.subr.mxu0 0.0
  %422 = vmatpush1.msra.mxu0 0.0
  %423 = vmatprep.subr.mxu0 0.0
  %424 = vmatpush1.msra.mxu0 0.0
  %425 = vmatprep.subr.mxu0 0.0
  %426 = vmatpush1.msra.mxu0 0.0
  %427 = vmatprep.subr.mxu0 0.0
  %428 = vmatpush1.msra.mxu0 0.0
  %429 = vmatprep.subr.mxu0 0.0
  %430 = vmatpush1.msra.mxu0 0.0
  %431 = vmatprep.subr.mxu0 0.0
  %432 = vmatpush1.msra.mxu0 0.0
  %433 = vmatprep.subr.mxu0 0.0
  %434 = vmatpush1.msra.mxu0 0.0
  %435 = vmatprep.subr.mxu0 0.0
  %436 = vmatpush1.msra.mxu0 0.0
  %437 = vmatprep.subr.mxu0 0.0
  %438 = vmatpush1.msra.mxu0 0.0
  %439 = vmatprep.subr.mxu0 0.0
  %440 = vmatpush1.msra.mxu0 %v333
  %441 = vmatprep.subr.mxu0 0.0
  %442 = vmatpush1.msra.mxu0 %v332
  %443 = vmatprep.subr.mxu0 0.0
  %444 = vmatpush1.msra.mxu0 %v331
  %445 = vmatprep.subr.mxu0 0.0
  %446 = vmatpush1.msra.mxu0 %v330
  %447 = vmatprep.subr.mxu0 0.0
  %448 = vmatpush2.msra.mxu0 0.0
  %449 = vmatprep.subr.mxu0 0.0
  %450 = vmatpush2.msra.mxu0 0.0
  %451 = vmatprep.subr.mxu0 0.0
  %452 = vmatpush2.msra.mxu0 0.0
  %453 = vmatprep.subr.mxu0 0.0
  %454 = vmatpush2.msra.mxu0 0.0
  %455 = vmatprep.subr.mxu0 0.0
  %456 = vmatpush2.msra.mxu0 0.0
  %457 = vmatprep.subr.mxu0 0.0
  %458 = vmatpush2.msra.mxu0 0.0
  %459 = vmatprep.subr.mxu0 0.0
  %460 = vmatpush2.msra.mxu0 0.0
  %461 = vmatprep.subr.mxu0 0.0
  %462 = vmatpush2.msra.mxu0 0.0
  %463 = vmatprep.subr.mxu0 0.0
  %464 = vmatpush2.msra.mxu0 0.0
  %465 = vmatprep.subr.mxu0 0.0
  %466 = vmatpush2.msra.mxu0 0.0
  %467 = vmatprep.subr.mxu0 0.0
  %468 = vmatpush2.msra.mxu0 0.0
  %469 = vmatprep.subr.mxu0 0.0
  %470 = vmatpush2.msra.mxu0 0.0
  %471 = vmatprep.subr.mxu0 0.0
  %472 = vmatpush2.msra.mxu0 0.0
  %473 = vmatprep.subr.mxu0 0.0
  %474 = vmatpush2.msra.mxu0 0.0
  %475 = vmatprep.subr.mxu0 0.0
  %476 = vmatpush2.msra.mxu0 0.0
  %477 = vmatprep.subr.mxu0 0.0
  %478 = vmatpush2.msra.mxu0 0.0
  %479 = vmatprep.mubr.f32.mxu0 0.0
  %480 = vmatmul.mubr.f32.gmra.mxu0 %v343
  %v481 = vpop.f32.mrf.mxu0
  %v482 = vadd.f32 %v412, %v481
  %v483 = vpop.f32.mrf.mxu0
  %484 = vdwg.mxu0
  %v485 = vmax.f32 %v482, 0.0
  %486 = vst [vmem:[%s5] sm:$0x3] %v485
  // Predicated region
  $region22: #{down_block_pallas.1} parent=0 // pred_check
    _
  $region23: #{down_block_pallas.1} parent=0 // pred_check_branch
    %488 = sbr.rel (0) target = $region25
  $region24: #{down_block_pallas.1} parent=0 // pred_region
    _
  $region25: #{down_block_pallas.1} parent=0 // pred_fallthru
    _
  // Predicated region
  $region26: #{down_block_pallas.1} parent=0 // pred_check
    _
  $region27: #{down_block_pallas.1} parent=0 // pred_check_branch
    %490 = sbr.rel (0) target = $region29
  $region28: #{down_block_pallas.1} parent=0 // pred_region
    _
  $region29: #{down_block_pallas.1} parent=0 // pred_fallthru
    _

</llo_original>
